<compile_context>
chip_gen: v6e
topology: v6e:2x2x1
jax: 0.10.0
libtpu: 0.0.40
codegen_flags: <defaults>
</compile_context>

<pallas_src>
import functools

import jax
import jax.numpy as jnp
from jax.experimental import pallas as pl
from jax.experimental.pallas import tpu as pltpu


def _round_up(x, m):
    return ((x + m - 1) // m) * m


def _remain_kernel(idx_ref, block_ref, out_ref, *, m, d, r):
    """Global-token pass-through + per-row gather along the valid-modality axis.

    idx_ref   : (tile, R)        int32   indices into the Mv = M-1 valid modalities
    block_ref : (tile, M*D)      float   full modality block, lane-dense
    out_ref   : (tile, (1+R)*D)  float   [global | gathered_0 | ... | gathered_{R-1}]
    """
    idx = idx_ref[...]                                   # (tile, R) int32
    blk = block_ref[...]                                 # (tile, M*D)
    tile = idx.shape[0]

    chunks = [blk[:, 0:d]]                               # global token pass-through
    mv = m - 1
    for j in range(r):                                   # R is tiny & static
        # hoisted lane-broadcast of the index (one per kept slot)
        selb = jnp.broadcast_to(idx[:, j:j + 1], (tile, d))   # (tile, D)
        acc = blk[:, d:2 * d]                            # valid modality 0
        for mm in range(1, mv):                          # Mv is tiny & static
            acc = jnp.where(selb == mm, blk[:, (mm + 1) * d:(mm + 2) * d], acc)
        chunks.append(acc)
    # single contiguous lane-dense store of the whole (tile, (1+R)*D) block
    out_ref[...] = jnp.concatenate(chunks, axis=1)


def temporal_remain_gather(remain_idx, block_flat, *, m, d,
                           vmem_budget_bytes=32 << 20):
    """Gather kept modalities (incl. global token pass-through).

    remain_idx : (N, R) int32, indices into the Mv = M-1 valid modalities
    block_flat : (N, M*D) activations, lane-dense
    returns    : (N, (1+R)*D)
    """
    n = block_flat.shape[0]
    r = remain_idx.shape[1]

    if r == 0:
        # degenerate config: nothing kept besides the global token
        return block_flat[:, :d]

    # ---- tile sizing from bytes (double-buffered in+out, ~20% headroom) ----
    bytes_per_row = (r * 4                                  # idx (int32)
                     + m * d * block_flat.dtype.itemsize    # block read
                     + (1 + r) * d * block_flat.dtype.itemsize)  # output write
    tile = int(0.8 * vmem_budget_bytes) // (2 * bytes_per_row)
    tile = max(8, (tile // 8) * 8)
    # guarantee >= 2 grid steps on medium/large n so "parallel" can shard the
    # grid across both TensorCores (v7x megacore); never exceed the row count.
    tile = min(tile, _round_up((n + 1) // 2, 8))
    grid = (n + tile - 1) // tile                          # ragged last block is OK

    out = pl.pallas_call(
        functools.partial(_remain_kernel, m=m, d=d, r=r),
        out_shape=jax.ShapeDtypeStruct((n, (1 + r) * d), block_flat.dtype),
        grid_spec=pltpu.PrefetchScalarGridSpec(
            num_scalar_prefetch=0,
            grid=(grid,),
            in_specs=[
                pl.BlockSpec((tile, r), lambda i: (i, 0)),
                pl.BlockSpec((tile, m * d), lambda i: (i, 0)),
            ],
            out_specs=pl.BlockSpec((tile, (1 + r) * d), lambda i: (i, 0)),
        ),
        compiler_params=pltpu.CompilerParams(
            dimension_semantics=("parallel",),
            vmem_limit_bytes=vmem_budget_bytes,
        ),
    )(remain_idx, block_flat)
    return out


def temporal_remain_forward(data_dict, idx_dict, padding_mask_dict,
                            temporal_cols, remain_rto, key):
    """Mirrors TemporalRemain.forward semantics."""
    temporal_data_li = [v for k, v in data_dict.items() if k in temporal_cols]
    block = jnp.stack(temporal_data_li, axis=-2)               # (B, T, M, D)
    b, t, m, d = block.shape

    pad = padding_mask_dict['temporal_padding_mask'].astype(jnp.float32)   # (B, T)
    fcst = padding_mask_dict['target_fcst_mask'].astype(jnp.float32)       # (B, T)
    revert_mask = jnp.repeat(pad[:, :, None], m, axis=-1)                  # (B, T, M)
    revert_mask = revert_mask.at[:, :, 1].set(fcst)

    global_mask = revert_mask[:, :, :1]                        # (B, T, 1)
    valid_mask = revert_mask[:, :, 1:]                         # (B, T, M-1)

    mv = m - 1
    r = int(mv * remain_rto)

    # index generation: argsort of random noise (plain JAX; no Pallas sort)
    noise = jax.random.uniform(key, (b, t, mv))
    shuffle_idx = jnp.argsort(noise, axis=-1)
    remain_idx = shuffle_idx[:, :, :r]
    masked_idx = shuffle_idx[:, :, r:]
    revert_idx = jnp.argsort(shuffle_idx, axis=-1)

    # --- Pallas kernel: global pass-through + gather of kept modalities ---
    n = b * t
    remain_flat = temporal_remain_gather(
        remain_idx.reshape(n, r).astype(jnp.int32),
        block.reshape(n, m * d),
        m=m, d=d,
    )
    remain_data = remain_flat.reshape(b, t, 1 + r, d)          # (B, T, 1+R, D)

    # --- mask path: tiny (B, T, Mv) gather, left to XLA (per perf review) ---
    gathered_mask = jnp.take_along_axis(valid_mask, remain_idx, axis=-1)  # (B, T, R)
    remain_mask = jnp.concatenate([global_mask, gathered_mask], axis=-1)  # (B, T, 1+R)

    idx_dict = dict(idx_dict)
    idx_dict.update({
        'temporal_block_remain_idx': remain_idx,
        'temporal_block_masked_idx': masked_idx,
        'temporal_block_revert_idx': revert_idx,
    })
    padding_mask_dict = dict(padding_mask_dict)
    padding_mask_dict.update({
        'temporal_block_remain_padding_mask': remain_mask,
        'temporal_block_revert_padding_mask': revert_mask,
    })
    return remain_data, idx_dict, padding_mask_dict


def _reference(block, revert_mask, remain_idx):
    """Pure JAX reference for the gather/concat (mirrors torch.gather + cat)."""
    global_data = block[:, :, :1, :]
    valid_data = block[:, :, 1:, :]
    global_mask = revert_mask[:, :, :1]
    valid_mask = revert_mask[:, :, 1:]
    d = block.shape[-1]
    idx_ = jnp.repeat(remain_idx[..., None], d, axis=-1)
    gathered = jnp.take_along_axis(valid_data, idx_, axis=-2)
    remain_data = jnp.concatenate([global_data, gathered], axis=-2)
    gathered_mask = jnp.take_along_axis(valid_mask, remain_idx, axis=-1)
    remain_mask = jnp.concatenate([global_mask, gathered_mask], axis=-1)
    return remain_data, remain_mask


if __name__ == "__main__":
    key = jax.random.PRNGKey(0)
    B, T, D = 2, 8, 32
    temporal_cols = ['global_token', 'target', 'feat_a', 'feat_b', 'feat_c']  # M = 5
    remain_rto = 0.75                                                          # R = 3

    # deterministic synthetic inputs
    keys = jax.random.split(key, len(temporal_cols) + 3)
    data_dict = {
        name: jax.random.normal(keys[i], (B, T, D), dtype=jnp.float32)
        for i, name in enumerate(temporal_cols)
    }
    padding_mask_dict = {
        'temporal_padding_mask': (jax.random.uniform(keys[-3], (B, T)) > 0.2),
        'target_fcst_mask': (jax.random.uniform(keys[-2], (B, T)) > 0.5),
    }
    idx_dict = {}
    noise_key = keys[-1]

    remain_data, idx_dict, padding_mask_dict = temporal_remain_forward(
        data_dict, idx_dict, padding_mask_dict, temporal_cols, remain_rto, noise_key)
    jax.block_until_ready(remain_data)

    # correctness check against a pure-JAX reference of the gather path
    block = jnp.stack([data_dict[k] for k in temporal_cols], axis=-2)
    ref_data, ref_mask = _reference(
        block,
        padding_mask_dict['temporal_block_revert_padding_mask'],
        idx_dict['temporal_block_remain_idx'],
    )
    assert jnp.allclose(remain_data, ref_data, atol=1e-6), "data mismatch"
    assert jnp.allclose(
        padding_mask_dict['temporal_block_remain_padding_mask'], ref_mask, atol=1e-6
    ), "mask mismatch"

    print("KERNEL_OK")
</pallas_src>

<mosaic_0001>
module attributes {stable_mosaic.version = 11 : i64} {
  func.func @_remain_kernel(%arg0: i32, %arg1: memref<8x3xi32, #tpu.memory_space<vmem>>, %arg2: memref<8x160xf32, #tpu.memory_space<vmem>>, %arg3: memref<8x128xf32, #tpu.memory_space<vmem>>) attributes {dimension_semantics = [#tpu.dimension_semantics<parallel>], iteration_bounds = array<i64: 2>, scalar_prefetch = 0 : i64, scratch_operands = 0 : i64, tpu.core_type = #tpu.core_type<tc>, window_params = [{transform_indices = @transform_0, window_bounds = array<i64: 8, 3>}, {transform_indices = @transform_1, window_bounds = array<i64: 8, 160>}, {transform_indices = @transform_2, window_bounds = array<i64: 8, 128>}]} {
    %c0 = arith.constant 0 : index
    %c0_0 = arith.constant 0 : index
    %0 = vector.load %arg1[%c0, %c0_0] : memref<8x3xi32, #tpu.memory_space<vmem>>, vector<8x3xi32>
    %c0_1 = arith.constant 0 : index
    %c0_2 = arith.constant 0 : index
    %1 = vector.load %arg2[%c0_1, %c0_2] : memref<8x160xf32, #tpu.memory_space<vmem>>, vector<8x160xf32>
    %2 = vector.extract_strided_slice %1 {offsets = [0, 0], sizes = [8, 32], strides = [1, 1]} : vector<8x160xf32> to vector<8x32xf32>
    %3 = vector.extract_strided_slice %0 {offsets = [0, 0], sizes = [8, 1], strides = [1, 1]} : vector<8x3xi32> to vector<8x1xi32>
    %4 = vector.shape_cast %3 : vector<8x1xi32> to vector<8x1xi32>
    %5 = vector.broadcast %4 : vector<8x1xi32> to vector<8x32xi32>
    %6 = vector.extract_strided_slice %1 {offsets = [0, 32], sizes = [8, 32], strides = [1, 1]} : vector<8x160xf32> to vector<8x32xf32>
    %c1_i32 = arith.constant 1 : i32
    %7 = vector.broadcast %c1_i32 : i32 to vector<8x32xi32>
    %8 = arith.cmpi eq, %5, %7 : vector<8x32xi32>
    %9 = vector.extract_strided_slice %1 {offsets = [0, 64], sizes = [8, 32], strides = [1, 1]} : vector<8x160xf32> to vector<8x32xf32>
    %10 = arith.select %8, %9, %6 : vector<8x32xi1>, vector<8x32xf32>
    %c2_i32 = arith.constant 2 : i32
    %11 = vector.broadcast %c2_i32 : i32 to vector<8x32xi32>
    %12 = arith.cmpi eq, %5, %11 : vector<8x32xi32>
    %13 = vector.extract_strided_slice %1 {offsets = [0, 96], sizes = [8, 32], strides = [1, 1]} : vector<8x160xf32> to vector<8x32xf32>
    %14 = arith.select %12, %13, %10 : vector<8x32xi1>, vector<8x32xf32>
    %c3_i32 = arith.constant 3 : i32
    %15 = vector.broadcast %c3_i32 : i32 to vector<8x32xi32>
    %16 = arith.cmpi eq, %5, %15 : vector<8x32xi32>
    %17 = vector.extract_strided_slice %1 {offsets = [0, 128], sizes = [8, 32], strides = [1, 1]} : vector<8x160xf32> to vector<8x32xf32>
    %18 = arith.select %16, %17, %14 : vector<8x32xi1>, vector<8x32xf32>
    %19 = vector.extract_strided_slice %0 {offsets = [0, 1], sizes = [8, 1], strides = [1, 1]} : vector<8x3xi32> to vector<8x1xi32>
    %20 = vector.shape_cast %19 : vector<8x1xi32> to vector<8x1xi32>
    %21 = vector.broadcast %20 : vector<8x1xi32> to vector<8x32xi32>
    %22 = vector.extract_strided_slice %1 {offsets = [0, 32], sizes = [8, 32], strides = [1, 1]} : vector<8x160xf32> to vector<8x32xf32>
    %c1_i32_3 = arith.constant 1 : i32
    %23 = vector.broadcast %c1_i32_3 : i32 to vector<8x32xi32>
    %24 = arith.cmpi eq, %21, %23 : vector<8x32xi32>
    %25 = vector.extract_strided_slice %1 {offsets = [0, 64], sizes = [8, 32], strides = [1, 1]} : vector<8x160xf32> to vector<8x32xf32>
    %26 = arith.select %24, %25, %22 : vector<8x32xi1>, vector<8x32xf32>
    %c2_i32_4 = arith.constant 2 : i32
    %27 = vector.broadcast %c2_i32_4 : i32 to vector<8x32xi32>
    %28 = arith.cmpi eq, %21, %27 : vector<8x32xi32>
    %29 = vector.extract_strided_slice %1 {offsets = [0, 96], sizes = [8, 32], strides = [1, 1]} : vector<8x160xf32> to vector<8x32xf32>
    %30 = arith.select %28, %29, %26 : vector<8x32xi1>, vector<8x32xf32>
    %c3_i32_5 = arith.constant 3 : i32
    %31 = vector.broadcast %c3_i32_5 : i32 to vector<8x32xi32>
    %32 = arith.cmpi eq, %21, %31 : vector<8x32xi32>
    %33 = vector.extract_strided_slice %1 {offsets = [0, 128], sizes = [8, 32], strides = [1, 1]} : vector<8x160xf32> to vector<8x32xf32>
    %34 = arith.select %32, %33, %30 : vector<8x32xi1>, vector<8x32xf32>
    %35 = vector.extract_strided_slice %0 {offsets = [0, 2], sizes = [8, 1], strides = [1, 1]} : vector<8x3xi32> to vector<8x1xi32>
    %36 = vector.shape_cast %35 : vector<8x1xi32> to vector<8x1xi32>
    %37 = vector.broadcast %36 : vector<8x1xi32> to vector<8x32xi32>
    %38 = vector.extract_strided_slice %1 {offsets = [0, 32], sizes = [8, 32], strides = [1, 1]} : vector<8x160xf32> to vector<8x32xf32>
    %c1_i32_6 = arith.constant 1 : i32
    %39 = vector.broadcast %c1_i32_6 : i32 to vector<8x32xi32>
    %40 = arith.cmpi eq, %37, %39 : vector<8x32xi32>
    %41 = vector.extract_strided_slice %1 {offsets = [0, 64], sizes = [8, 32], strides = [1, 1]} : vector<8x160xf32> to vector<8x32xf32>
    %42 = arith.select %40, %41, %38 : vector<8x32xi1>, vector<8x32xf32>
    %c2_i32_7 = arith.constant 2 : i32
    %43 = vector.broadcast %c2_i32_7 : i32 to vector<8x32xi32>
    %44 = arith.cmpi eq, %37, %43 : vector<8x32xi32>
    %45 = vector.extract_strided_slice %1 {offsets = [0, 96], sizes = [8, 32], strides = [1, 1]} : vector<8x160xf32> to vector<8x32xf32>
    %46 = arith.select %44, %45, %42 : vector<8x32xi1>, vector<8x32xf32>
    %c3_i32_8 = arith.constant 3 : i32
    %47 = vector.broadcast %c3_i32_8 : i32 to vector<8x32xi32>
    %48 = arith.cmpi eq, %37, %47 : vector<8x32xi32>
    %49 = vector.extract_strided_slice %1 {offsets = [0, 128], sizes = [8, 32], strides = [1, 1]} : vector<8x160xf32> to vector<8x32xf32>
    %50 = arith.select %48, %49, %46 : vector<8x32xi1>, vector<8x32xf32>
    %51 = tpu.concatenate %2, %18, %34, %50 in 1 : vector<8x32xf32>, vector<8x32xf32>, vector<8x32xf32>, vector<8x32xf32> -> vector<8x128xf32>
    %c0_9 = arith.constant 0 : index
    %c0_10 = arith.constant 0 : index
    %52 = vector.load %arg3[%c0_9, %c0_10] : memref<8x128xf32, #tpu.memory_space<vmem>>, vector<8x128xf32>
    tpu.vector_store %arg3[%c0_9, %c0_10], %51 {strides = array<i32>} : memref<8x128xf32, #tpu.memory_space<vmem>>, vector<8x128xf32>,
    return
  }
  func.func @transform_0(%arg0: i32) -> (i32, i32) {
    %c0_i32 = arith.constant 0 : i32
    %c0_i32_0 = arith.constant 0 : i32
    return %arg0, %c0_i32 : i32, i32
  }
  func.func @transform_1(%arg0: i32) -> (i32, i32) {
    %c0_i32 = arith.constant 0 : i32
    %c0_i32_0 = arith.constant 0 : i32
    return %arg0, %c0_i32 : i32, i32
  }
  func.func @transform_2(%arg0: i32) -> (i32, i32) {
    %c0_i32 = arith.constant 0 : i32
    %c0_i32_0 = arith.constant 0 : i32
    return %arg0, %c0_i32 : i32, i32
  }
}

</mosaic_0001>

<llo_original>
// kernel: tpu_custom_call.1
$region0: #{tpu_custom_call.1}
  #allocation0 [shape = 'u32[]', space=smem, size = 0x4, offset = 0x4, fixed_abs, tag = 'smem constant byte address 0x4 - core index']
  #allocation1 [shape = 'u32[144,128]{1,0:T(1,128)}', space=vmem, size = 0x12000, scoped, tag = 'internal scratch']
  %s0 = inlined_call_operand.vmem [shape: s32[16,3], index: 0, kind: input, shape index: {}]
  %s1 = inlined_call_operand.hbm [shape: f32[16,160], index: 1, kind: input, shape index: {}]
  %s2 = inlined_call_operand.hbm [shape: f32[16,128], index: 2, kind: output, shape index: {}]
  %s3 = sld [smem:[#allocation0]]
  $region45: #{tpu_custom_call.1} parent=0
    _
  %s5 = ssub.s32 1, %s3
  %s6 = scalar_select 0, %s5, %s3
  $region1: #{tpu_custom_call.1} parent=0
    #allocation2 [shape = 'u8[16384]{0}', space=vmem, size = 0x4000, scoped, tag = 'input window, operand 1']
    #allocation3 [shape = 's32[2]{0}', space=sflag, size = 0x8, scoped, tag = 'scoped memory for tpu_custom_call.1']
    #allocation4 [shape = 's32[2]{0}', space=sflag, size = 0x8, scoped, tag = 'scoped memory for tpu_custom_call.1']
    #allocation5 [shape = 'u8[8192]{0}', space=vmem, size = 0x2000, scoped, tag = 'output window, operand 0']
    %7 = vsyncpa [#allocation3], 0
    %s8 = scalar_lea.sflag [#allocation3], 1
    %9 = vsyncpa %s8, 0
    %10 = vsyncpa [#allocation4], 0
    %s11 = scalar_lea.sflag [#allocation4], 1
    %12 = vsyncpa %s11, 0
    loop: start=0, step=1, limit=4
    $region2: #{tpu_custom_call.1} parent=1 // loop_pre_header
      _
    $region3: #{tpu_custom_call.1} parent=1 // loop_header
      %s14 = sphi 0, %s18
      %p15 = scmp.ge.s32.totalorder %s14, 4
      %s24 = sphi 0, %s26
      %s27 = sphi 0, %s24
      %s28 = sphi 0, %s27
      %s44 = sphi 0, %s28
      %s50 = sphi 0, %s52
      %s53 = sphi 0, %s50
      %s54 = sphi 0, %s53
      %s70 = sphi 0, %s54
      %s76 = sphi 0, %s78
      %s79 = sphi 0, %s76
      %s80 = sphi 0, %s79
      %s96 = sphi 0, %s80
    $region4: #{tpu_custom_call.1} parent=1 // loop_header_branch
      %17 = sbr.rel (%p15) target = $region8
    $region5: #{tpu_custom_call.1} parent=1 // loop_body
      %s19 = ssub.s32 %s14, 1
      %s20 = ssub.s32 %s14, 2
      %s21 = sadd.s32 %s14, 1
      %s22 = ssub.s32 %s14, %s21
      %p23 = scmp.eq.s32.totalorder %s22, 0
      %s25 = sadd.s32 %s24, 1
      %s26 = scalar_select %p23, %s24, %s25
      %p29 = pneg %p23
      %p30 = scmp.eq.s32.totalorder %s14, 1
      %p31 = por %p29, %p30
      %p32 = scmp.ne.s32.totalorder %s24, %s27
      %p33 = scmp.eq.s32.totalorder %s14, 0
      %p34 = por %p32, %p33
      %p35 = scmp.ne.s32.totalorder %s24, %s27
      %p36 = scmp.eq.s32.totalorder %s19, 1
      %p37 = por %p35, %p36
      %p38 = scmp.ne.s32.totalorder %s27, %s28
      %p39 = scmp.eq.s32.totalorder %s19, 0
      %p40 = por %p38, %p39
      %p41 = scmp.ne.s32.totalorder %s27, %s28
      %p42 = scmp.eq.s32.totalorder %s20, 1
      %p43 = por %p41, %p42
      %p45 = scmp.ne.s32.totalorder %s28, %s44
      %p46 = scmp.eq.s32.totalorder %s20, 0
      %p47 = por %p45, %p46
      %s48 = ssub.s32 %s14, %s21
      %p49 = scmp.eq.s32.totalorder %s48, 0
      %s51 = sadd.s32 %s50, 1
      %s52 = scalar_select %p49, %s50, %s51
      %p55 = pneg %p49
      %p56 = scmp.eq.s32.totalorder %s14, 1
      %p57 = por %p55, %p56
      %p58 = scmp.ne.s32.totalorder %s50, %s53
      %p59 = scmp.eq.s32.totalorder %s14, 0
      %p60 = por %p58, %p59
      %p61 = scmp.ne.s32.totalorder %s50, %s53
      %p62 = scmp.eq.s32.totalorder %s19, 1
      %p63 = por %p61, %p62
      %p64 = scmp.ne.s32.totalorder %s53, %s54
      %p65 = scmp.eq.s32.totalorder %s19, 0
      %p66 = por %p64, %p65
      %p67 = scmp.ne.s32.totalorder %s53, %s54
      %p68 = scmp.eq.s32.totalorder %s20, 1
      %p69 = por %p67, %p68
      %p71 = scmp.ne.s32.totalorder %s54, %s70
      %p72 = scmp.eq.s32.totalorder %s20, 0
      %p73 = por %p71, %p72
      %s74 = ssub.s32 %s14, %s21
      %p75 = scmp.eq.s32.totalorder %s74, 0
      %s77 = sadd.s32 %s76, 1
      %s78 = scalar_select %p75, %s76, %s77
      %p81 = pneg %p75
      %p82 = scmp.eq.s32.totalorder %s14, 1
      %p83 = por %p81, %p82
      %p84 = scmp.ne.s32.totalorder %s76, %s79
      %p85 = scmp.eq.s32.totalorder %s14, 0
      %p86 = por %p84, %p85
      %p87 = scmp.ne.s32.totalorder %s76, %s79
      %p88 = scmp.eq.s32.totalorder %s19, 1
      %p89 = por %p87, %p88
      %p90 = scmp.ne.s32.totalorder %s79, %s80
      %p91 = scmp.eq.s32.totalorder %s19, 0
      %p92 = por %p90, %p91
      %p93 = scmp.ne.s32.totalorder %s79, %s80
      %p94 = scmp.eq.s32.totalorder %s20, 1
      %p95 = por %p93, %p94
      %p97 = scmp.ne.s32.totalorder %s80, %s96
      %p98 = scmp.eq.s32.totalorder %s20, 0
      %p99 = por %p97, %p98
      %p100 = scmp.le.s32.totalorder 1, %s14
      %p101 = scmp.lt.s32.totalorder %s14, 3
      %p102 = pnand %p100, %p101
      %p103 = pneg %p102
      // Predicated region
      $region9: #{tpu_custom_call.1} parent=5 // pred_check
        _
      $region10: #{tpu_custom_call.1} parent=5 // pred_check_branch
        %105 = sbr.rel (%p102) target = $region12
      $region11: #{tpu_custom_call.1} parent=5 // pred_region
        %s106 = ssub.s32 %s14, 1
      $region12: #{tpu_custom_call.1} parent=5 // pred_fallthru
        _
      %p107 = scmp.lt.s32.totalorder %s14, 2
      // Predicated region
      $region13: #{tpu_custom_call.1} parent=5 // pred_check
        %p108 = pneg %p107
      $region14: #{tpu_custom_call.1} parent=5 // pred_check_branch
        %110 = sbr.rel (%p108) target = $region16
      $region15: #{tpu_custom_call.1} parent=5 // pred_region
        // Predicated region
        $region17: #{tpu_custom_call.1} parent=15 // pred_check
          %p111 = pneg %p34
        $region18: #{tpu_custom_call.1} parent=15 // pred_check_branch
          %113 = sbr.rel (%p111) target = $region20
        $region19: #{tpu_custom_call.1} parent=15 // pred_region
          %p114 = scmp.lt.s32.totalorder %s14, 1
          %s115 = scalar_select %p114, %s14, 1
          %s116 = smul.addr %s115, 8
          %s117 = scalar_lea.vmem %s0, %s116
        $region20: #{tpu_custom_call.1} parent=15 // pred_fallthru
          _
        // Predicated region
        $region21: #{tpu_custom_call.1} parent=15 // pred_check
          %p118 = pneg %p60
        $region22: #{tpu_custom_call.1} parent=15 // pred_check_branch
          %120 = sbr.rel (%p118) target = $region24
        $region23: #{tpu_custom_call.1} parent=15 // pred_region
          %s121 = sand.u32 %s50, 1
          %s122 = scalar_lea.sflag [#allocation3], %s121
          %s123 = sand.u32 %s50, 1
          %s124 = smul.addr %s123, 16
          %s125 = scalar_lea.vmem [#allocation2], %s124
          %s127 = ssub.s32 256, 256
          %128 = vsyncadd %s122, %s127
          %s129 = smul.addr %s14, 2
          %s130 = smul.addr %s129, 128
          %s131 = scalar_lea.hbm %s1, %s130
          %s133 = sshll.u32 %s125, 4
          %s134 = int_to_ptr.vmem [resolvable:$true] %s133
          %136 = dma.hbm_to_vmem [thread:$0]  %s131, 256, %s134, %s122
        $region24: #{tpu_custom_call.1} parent=15 // pred_fallthru
          _
      $region16: #{tpu_custom_call.1} parent=5 // pred_fallthru
        _
      %p137 = scmp.le.s32.totalorder 1, %s14
      %p138 = scmp.lt.s32.totalorder %s14, 3
      %p139 = pnand %p137, %p138
      %p140 = pneg %p139
      // Predicated region
      $region25: #{tpu_custom_call.1} parent=5 // pred_check
        _
      $region26: #{tpu_custom_call.1} parent=5 // pred_check_branch
        %142 = sbr.rel (%p139) target = $region28
      $region27: #{tpu_custom_call.1} parent=5 // pred_region
        %s143 = ssub.s32 %s14, 1
        %s144 = sand.u32 %s53, 1
        %s145 = scalar_lea.sflag [#allocation3], %s144
        %s146 = sand.u32 %s53, 1
        %s147 = smul.addr %s146, 16
        %s148 = scalar_lea.vmem [#allocation2], %s147
        // Predicated region
        $region29: #{tpu_custom_call.1} parent=27 // pred_check
          %p149 = pneg %p66
        $region30: #{tpu_custom_call.1} parent=27 // pred_check_branch
          %151 = sbr.rel (%p149) target = $region32
        $region31: #{tpu_custom_call.1} parent=27 // pred_region
          %152 = dma.done %s145, 256
        $region32: #{tpu_custom_call.1} parent=27 // pred_fallthru
          _
        %p153 = scmp.lt.s32.totalorder %s19, 1
        %s154 = scalar_select %p153, %s19, 1
        %s155 = smul.addr %s154, 8
        %s156 = scalar_lea.vmem %s0, %s155
        %p157 = pneg %p40
        %p158 = pneg %p37
        %s159 = sand.u32 %s53, 1
        %s160 = scalar_lea.sflag [#allocation3], %s159
        %s161 = sand.u32 %s53, 1
        %s162 = smul.addr %s161, 16
        %s163 = scalar_lea.vmem [#allocation2], %s162
        %p164 = pneg %p66
        %p165 = pneg %p63
        %p166 = pneg %p92
        %p167 = pneg %p89
        %s168 = sand.u32 %s79, 1
        %s169 = scalar_lea.sflag [#allocation4], %s168
        %s170 = sand.u32 %s79, 1
        %s171 = smul.addr %s170, 8
        %s172 = scalar_lea.vmem [#allocation5], %s171
        %p173 = scmp.lt.s32.totalorder %s19, 1
        %s174 = scalar_select %p173, %s19, 1
        %s175 = smul.addr %s174, 8
        %s176 = scalar_lea.vmem %s0, %s175
        %v177 = vld [vmem:[%s176] sm:$0xff]
        %v178 = vld [vmem:[%s148] sm:$0xff]
        %v179 = vld [vmem:[%s148 + $0x8] sm:$0xff]
        %180 = vset.pattern.permute.xlu0 0
        %181 = vperm.xlu0 %180, %v177
        %v182 = vpop.permute.xlu0 %181
        %vm183 = vcmp.eq.s32.totalorder %v182, 1
        %185 = vrot.lane.b32.xlu0 %v178, 32
        %v186 = vpop.permute.xlu0 %185
        %v188 = vsel %vm183, %v178, %v186
        %vm189 = vcmp.eq.s32.totalorder %v182, 2
        %191 = vrot.lane.b32.xlu0 %v188, 32
        %v192 = vpop.permute.xlu0 %191
        %v194 = vsel %vm189, %v178, %v192
        %vm195 = vcmp.eq.s32.totalorder %v182, 3
        %197 = vrot.lane.b32.xlu0 %v194, 32
        %v198 = vpop.permute.xlu0 %197
        %v200 = vsel %vm195, %v179, %v198
        %201 = vset.pattern.permute.xlu0 1
        %202 = vperm.xlu0 %201, %v177
        %v203 = vpop.permute.xlu0 %202
        %vm204 = vcmp.eq.s32.totalorder %v203, 1
        %v205 = vsel %vm204, %v178, %v186
        %vm206 = vcmp.eq.s32.totalorder %v203, 2
        %208 = vrot.lane.b32.xlu0 %v205, 32
        %v209 = vpop.permute.xlu0 %208
        %v211 = vsel %vm206, %v178, %v209
        %vm212 = vcmp.eq.s32.totalorder %v203, 3
        %214 = vrot.lane.b32.xlu0 %v211, 32
        %v215 = vpop.permute.xlu0 %214
        %v217 = vsel %vm212, %v179, %v215
        %218 = vset.pattern.permute.xlu0 2
        %219 = vperm.xlu0 %218, %v177
        %v220 = vpop.permute.xlu0 %219
        %vm221 = vcmp.eq.s32.totalorder %v220, 1
        %v222 = vsel %vm221, %v178, %v186
        %vm223 = vcmp.eq.s32.totalorder %v220, 2
        %225 = vrot.lane.b32.xlu0 %v222, 32
        %v226 = vpop.permute.xlu0 %225
        %v228 = vsel %vm223, %v178, %v226
        %vm229 = vcmp.eq.s32.totalorder %v220, 3
        %231 = vrot.lane.b32.xlu0 %v228, 32
        %v232 = vpop.permute.xlu0 %231
        %v234 = vsel %vm229, %v179, %v232
        %236 = vrot.lane.b32.xlu0 %v200, 32
        %v237 = vpop.permute.xlu0 %236
        %240 = vrot.lane.b32.xlu0 %v217, 64
        %v241 = vpop.permute.xlu0 %240
        %244 = vrot.lane.b32.xlu0 %v234, 96
        %v245 = vpop.permute.xlu0 %244
        %vm247 = vcmask 261120
        %v248 = vsel %vm247, %v178, %v237
        %vm249 = vcmask 523264
        %v250 = vsel %vm249, %v248, %v241
        %vm251 = vcmask 785408
        %v252 = vsel %vm251, %v250, %v245
        %253 = vst [vmem:[%s172] sm:$0xff] %v252
        %s254 = sand.u32 %s79, 1
        %s255 = scalar_lea.sflag [#allocation4], %s254
        %s256 = sand.u32 %s79, 1
        %s257 = smul.addr %s256, 8
        %s258 = scalar_lea.vmem [#allocation5], %s257
        // Predicated region
        $region33: #{tpu_custom_call.1} parent=27 // pred_check
          %p259 = pneg %p89
        $region34: #{tpu_custom_call.1} parent=27 // pred_check_branch
          %261 = sbr.rel (%p259) target = $region36
        $region35: #{tpu_custom_call.1} parent=27 // pred_region
          %s263 = ssub.s32 128, 128
          %264 = vsyncadd %s255, %s263
          %s265 = smul.addr %s19, 128
          %s266 = scalar_lea.hbm %s2, %s265
          %s268 = sshll.u32 %s258, 4
          %s269 = int_to_ptr.vmem [resolvable:$true] %s268
          %271 = dma.vmem_to_hbm [thread:$0]  %s269, 128, %s266, %s255
        $region36: #{tpu_custom_call.1} parent=27 // pred_fallthru
          _
      $region28: #{tpu_custom_call.1} parent=5 // pred_fallthru
        _
      %p272 = scmp.le.s32.totalorder 2, %s14
      // Predicated region
      $region37: #{tpu_custom_call.1} parent=5 // pred_check
        %p273 = pneg %p272
      $region38: #{tpu_custom_call.1} parent=5 // pred_check_branch
        %275 = sbr.rel (%p273) target = $region40
      $region39: #{tpu_custom_call.1} parent=5 // pred_region
        %s276 = ssub.s32 %s14, 2
        // Predicated region
        $region41: #{tpu_custom_call.1} parent=39 // pred_check
          %p277 = pneg %p95
        $region42: #{tpu_custom_call.1} parent=39 // pred_check_branch
          %279 = sbr.rel (%p277) target = $region44
        $region43: #{tpu_custom_call.1} parent=39 // pred_region
          %s280 = sand.u32 %s80, 1
          %s281 = scalar_lea.sflag [#allocation4], %s280
          %s282 = sand.u32 %s80, 1
          %s283 = smul.addr %s282, 8
          %s284 = scalar_lea.vmem [#allocation5], %s283
          %285 = dma.done %s281, 128
        $region44: #{tpu_custom_call.1} parent=39 // pred_fallthru
          _
      $region40: #{tpu_custom_call.1} parent=5 // pred_fallthru
        _
    $region6: #{tpu_custom_call.1} parent=1 // loop_footer
      %s18 = sadd.s32 1, %s14
    $region7: #{tpu_custom_call.1} parent=1 // loop_footer_branch
      %13 = sbr.rel target = $region3
    $region8: #{tpu_custom_call.1} parent=1 // loop_exit
      _
    %286 = vsyncpa [#allocation3], 1
    %s287 = scalar_lea.sflag [#allocation3], 1
    %288 = vsyncpa %s287, 1
    %289 = vsyncpa [#allocation4], 1
    %s290 = scalar_lea.sflag [#allocation4], 1
    %291 = vsyncpa %s290, 1

</llo_original>
